<compile_context>
chip_gen: v7x
topology: tpu7x:2x2x1
jax: 0.10.0
libtpu: 0.0.40
codegen_flags: <defaults>
</compile_context>

<pallas_src>
import jax
import jax.numpy as jnp
from jax.experimental import pallas as pl
from jax.experimental.pallas import tpu as pltpu

_LANE = 128     # vreg lane width
_SUBLANE = 8    # vreg sublane count (f32)


def _round_up(x, m):
    return ((x + m - 1) // m) * m


# ----------------------------- Pallas kernel --------------------------------
def _ibnib_mlp_kernel(x_ref, w1_ref, b1_ref, w2_ref, b2_ref, w3_ref, b3_ref,
                      out_ref):
    """Fused 3-layer MLP: relu(x@W1+b1) -> relu(.@W2+b2) -> .@W3+b3.

    Matmuls run on the MXU in the weights' dtype (bf16 by default) with f32
    accumulation; the bias-add/ReLU epilogue is kept in f32 (v5e-safe: no
    bf16 VALU there, so we avoid a convert storm on the VPU slot).
    """
    cd = w1_ref.dtype
    x = x_ref[...]

    h1 = jnp.dot(x, w1_ref[...], preferred_element_type=jnp.float32)
    h1 = jnp.maximum(h1 + b1_ref[...], 0.0)

    h2 = jnp.dot(h1.astype(cd), w2_ref[...], preferred_element_type=jnp.float32)
    h2 = jnp.maximum(h2 + b2_ref[...], 0.0)

    out = jnp.dot(h2.astype(cd), w3_ref[...], preferred_element_type=jnp.float32)
    out_ref[...] = (out + b3_ref[...]).astype(out_ref.dtype)


# ------------------------------- wrapper -------------------------------------
def ibnib_comm_forward(inputs, params, *, batch_tile=None,
                       compute_dtype=jnp.bfloat16):
    """IBNIBComm forward: massage = fc3(relu(fc2(relu(fc1(inputs))))).

    inputs: [B, input_shape] float32
    params: dict of f32 arrays, weights pre-transposed to [in, out]:
            w1 [F,H], b1 [1,H], w2 [H,H], b2 [1,H], w3 [H,M], b3 [1,M]
            where M = 2 * comm_embed_dim * n_agents.
    """
    B, F = inputs.shape
    H = params["w1"].shape[1]
    M = params["w3"].shape[1]
    out_dtype = inputs.dtype

    # --- lane-dense output: pad message dim to a multiple of 128 lanes ------
    M_pad = _round_up(M, _LANE)

    # --- batch tile: amortize ~0.35 us/step overhead, keep f32 activations in
    #     vregs, and give v7x's two TensorCores >=2 parallel steps at large B.
    #     (Sweep {256, 512, 1024} for very large B.) ---------------------------
    if batch_tile is None:
        batch_tile = min(512, _round_up(B, _SUBLANE))
    tb = _round_up(batch_tile, _SUBLANE)
    B_pad = _round_up(B, tb)          # ragged batches: pad, then slice at the end

    x = inputs
    if B_pad != B:
        x = jnp.pad(x, ((0, B_pad - B), (0, 0)))

    w3, b3 = params["w3"], params["b3"]
    if M_pad != M:
        w3 = jnp.pad(w3, ((0, 0), (0, M_pad - M)))
        b3 = jnp.pad(b3, ((0, 0), (0, M_pad - M)))

    # --- bf16 MXU operands (f32 accumulation in-kernel); biases stay f32 ----
    cd = jnp.dtype(compute_dtype)
    x = x.astype(cd)
    w1 = params["w1"].astype(cd)
    w2 = params["w2"].astype(cd)
    w3 = w3.astype(cd)
    b1 = params["b1"].astype(jnp.float32)
    b2 = params["b2"].astype(jnp.float32)
    b3 = b3.astype(jnp.float32)

    grid = (B_pad // tb,)

    # Weights/biases use constant index maps, so the pipeliner keeps them
    # resident and never re-copies them across grid steps.  (pl.Buffered(1)
    # would additionally halve their VMEM footprint for very large H; not
    # needed at these sizes, so we keep the robust default buffering.)
    in_specs = [
        pl.BlockSpec((tb, F), lambda i: (i, 0)),       # x (batch-tiled)
        pl.BlockSpec((F, H), lambda i: (0, 0)),        # w1
        pl.BlockSpec((1, H), lambda i: (0, 0)),        # b1
        pl.BlockSpec((H, H), lambda i: (0, 0)),        # w2
        pl.BlockSpec((1, H), lambda i: (0, 0)),        # b2
        pl.BlockSpec((H, M_pad), lambda i: (0, 0)),    # w3 (lane-padded)
        pl.BlockSpec((1, M_pad), lambda i: (0, 0)),    # b3 (lane-padded)
    ]
    out_spec = pl.BlockSpec((tb, M_pad), lambda i: (i, 0))

    # --- advisory cost estimate so XLA schedules the call sensibly ----------
    cb = cd.itemsize
    ob = jnp.dtype(out_dtype).itemsize
    flops = 2 * B_pad * (F * H + H * H + H * M_pad)
    bytes_accessed = (B_pad * F * cb
                      + (F * H + H * H + H * M_pad) * cb
                      + (2 * H + M_pad) * 4
                      + B_pad * M_pad * ob)
    cost = pl.CostEstimate(flops=flops, transcendentals=0,
                           bytes_accessed=bytes_accessed)

    # --- VMEM budget: raise the scoped limit only if the tile needs it ------
    vmem_needed = (2 * tb * F * cb                       # x, double-buffered
                   + 2 * tb * M_pad * ob                 # out, double-buffered
                   + 2 * (F * H + H * H + H * M_pad) * cb  # weights
                   + 2 * (2 * H + M_pad) * 4             # biases
                   + tb * (2 * H + M_pad) * 4)           # f32 activations
    compiler_kwargs = dict(dimension_semantics=("parallel",))
    if vmem_needed > 16 * 1024 * 1024:
        # headroom x2, capped at v7x physical VMEM (64 MiB per TensorCore)
        compiler_kwargs["vmem_limit_bytes"] = min(64 * 1024 * 1024,
                                                  int(2 * vmem_needed))

    out = pl.pallas_call(
        _ibnib_mlp_kernel,
        out_shape=jax.ShapeDtypeStruct((B_pad, M_pad), out_dtype),
        grid_spec=pl.GridSpec(
            grid=grid,
            in_specs=in_specs,
            out_specs=out_spec,
        ),
        compiler_params=pltpu.CompilerParams(**compiler_kwargs),
        cost_estimate=cost,
    )(x, w1, b1, w2, b2, w3, b3)

    # strip the batch padding and the lane padding of the message dimension
    return out[:B, :M]


# ------------------------- deterministic param init -------------------------
def init_params(key, input_shape, rnn_hidden_dim, comm_embed_dim, n_agents):
    """Synthetic init mimicking nn.Linear's uniform fan-in init.

    Weights are stored already transposed to [in, out] for the kernel.
    """
    msg_dim = 2 * comm_embed_dim * n_agents
    keys = jax.random.split(key, 6)

    def linear(kw, kb, fan_in, fan_out):
        bound = 1.0 / jnp.sqrt(fan_in)
        w = jax.random.uniform(kw, (fan_in, fan_out), jnp.float32,
                               minval=-bound, maxval=bound)
        b = jax.random.uniform(kb, (1, fan_out), jnp.float32,
                               minval=-bound, maxval=bound)
        return w, b

    w1, b1 = linear(keys[0], keys[1], input_shape, rnn_hidden_dim)
    w2, b2 = linear(keys[2], keys[3], rnn_hidden_dim, rnn_hidden_dim)
    w3, b3 = linear(keys[4], keys[5], rnn_hidden_dim, msg_dim)
    return {"w1": w1, "b1": b1, "w2": w2, "b2": b2, "w3": w3, "b3": b3}


def reference_forward(inputs, p):
    h1 = jnp.maximum(inputs @ p["w1"] + p["b1"], 0.0)
    h2 = jnp.maximum(h1 @ p["w2"] + p["b2"], 0.0)
    return h2 @ p["w3"] + p["b3"]


# ---------------------------------- main -------------------------------------
if __name__ == "__main__":
    # Small shapes consistent with the module's forward:
    #   args.n_agents = 2, args.comm_embed_dim = 4, args.rnn_hidden_dim = 32,
    #   input_shape = 32, flattened batch (bs * n_agents) = 8
    n_agents = 2
    comm_embed_dim = 4
    rnn_hidden_dim = 32
    input_shape = 32
    batch = 8
    msg_dim = 2 * comm_embed_dim * n_agents

    key = jax.random.PRNGKey(0)
    k_param, k_x = jax.random.split(key)
    params = init_params(k_param, input_shape, rnn_hidden_dim,
                         comm_embed_dim, n_agents)
    inputs = jax.random.normal(k_x, (batch, input_shape), jnp.float32)

    ref = reference_forward(inputs, params)

    # Default bf16-MXU path (f32 accumulation) — relaxed tolerance vs f32 ref.
    massage = jax.block_until_ready(ibnib_comm_forward(inputs, params))
    assert massage.shape == (batch, msg_dim)
    assert massage.dtype == inputs.dtype
    assert jnp.allclose(massage, ref, atol=5e-2, rtol=5e-2)

    # f32 compute path — tight check of the fused kernel structure.
    massage_f32 = jax.block_until_ready(
        ibnib_comm_forward(inputs, params, compute_dtype=jnp.float32))
    assert jnp.allclose(massage_f32, ref, atol=1e-5, rtol=1e-5)

    # Ragged batch exercises the pad-to-tile path (no `assert B % tb == 0`).
    out_ragged = jax.block_until_ready(
        ibnib_comm_forward(inputs[:6], params, compute_dtype=jnp.float32))
    assert out_ragged.shape == (6, msg_dim)
    assert jnp.allclose(out_ragged, ref[:6], atol=1e-5, rtol=1e-5)

    print("KERNEL_OK")
</pallas_src>

<mosaic_0001>
module attributes {stable_mosaic.version = 11 : i64} {
  func.func @_ibnib_mlp_kernel(%arg0: i32, %arg1: memref<8x32xbf16, #tpu.memory_space<vmem>>, %arg2: memref<32x32xbf16, #tpu.memory_space<vmem>>, %arg3: memref<1x32xf32, #tpu.memory_space<vmem>>, %arg4: memref<32x32xbf16, #tpu.memory_space<vmem>>, %arg5: memref<1x32xf32, #tpu.memory_space<vmem>>, %arg6: memref<32x128xbf16, #tpu.memory_space<vmem>>, %arg7: memref<1x128xf32, #tpu.memory_space<vmem>>, %arg8: memref<8x128xf32, #tpu.memory_space<vmem>>) attributes {dimension_semantics = [#tpu.dimension_semantics<parallel>], iteration_bounds = array<i64: 1>, scalar_prefetch = 0 : i64, scratch_operands = 0 : i64, tpu.core_type = #tpu.core_type<tc>, window_params = [{transform_indices = @transform_0, window_bounds = array<i64: 8, 32>}, {pipeline_mode = #tpu.pipeline_mode<synchronous>, transform_indices = @transform_1, window_bounds = array<i64: 32, 32>}, {pipeline_mode = #tpu.pipeline_mode<synchronous>, transform_indices = @transform_2, window_bounds = array<i64: 1, 32>}, {pipeline_mode = #tpu.pipeline_mode<synchronous>, transform_indices = @transform_3, window_bounds = array<i64: 32, 32>}, {pipeline_mode = #tpu.pipeline_mode<synchronous>, transform_indices = @transform_4, window_bounds = array<i64: 1, 32>}, {pipeline_mode = #tpu.pipeline_mode<synchronous>, transform_indices = @transform_5, window_bounds = array<i64: 32, 128>}, {pipeline_mode = #tpu.pipeline_mode<synchronous>, transform_indices = @transform_6, window_bounds = array<i64: 1, 128>}, {transform_indices = @transform_7, window_bounds = array<i64: 8, 128>}]} {
    %c0 = arith.constant 0 : index
    %c0_0 = arith.constant 0 : index
    %0 = vector.load %arg1[%c0, %c0_0] : memref<8x32xbf16, #tpu.memory_space<vmem>>, vector<8x32xbf16>
    %c0_1 = arith.constant 0 : index
    %c0_2 = arith.constant 0 : index
    %1 = vector.load %arg2[%c0_1, %c0_2] : memref<32x32xbf16, #tpu.memory_space<vmem>>, vector<32x32xbf16>
    %cst = arith.constant dense<0.000000e+00> : vector<8x32xf32>
    %2 = tpu.matmul %0, %1, %cst {dimension_numbers = #tpu.dot_dimension_numbers<[1], [0], [0], [1], [0, 0, 1, 1], [], []>} : vector<8x32xbf16>, vector<32x32xbf16>, vector<8x32xf32> -> vector<8x32xf32>
    %c0_3 = arith.constant 0 : index
    %c0_4 = arith.constant 0 : index
    %3 = vector.load %arg3[%c0_3, %c0_4] : memref<1x32xf32, #tpu.memory_space<vmem>>, vector<1x32xf32>
    %4 = vector.broadcast %3 : vector<1x32xf32> to vector<8x32xf32>
    %5 = arith.addf %2, %4 : vector<8x32xf32>
    %cst_5 = arith.constant 0.000000e+00 : f32
    %6 = vector.broadcast %cst_5 : f32 to vector<8x32xf32>
    %7 = arith.maximumf %5, %6 : vector<8x32xf32>
    %8 = arith.truncf %7 : vector<8x32xf32> to vector<8x32xbf16>
    %c0_6 = arith.constant 0 : index
    %c0_7 = arith.constant 0 : index
    %9 = vector.load %arg4[%c0_6, %c0_7] : memref<32x32xbf16, #tpu.memory_space<vmem>>, vector<32x32xbf16>
    %cst_8 = arith.constant dense<0.000000e+00> : vector<8x32xf32>
    %10 = tpu.matmul %8, %9, %cst_8 {dimension_numbers = #tpu.dot_dimension_numbers<[1], [0], [0], [1], [0, 0, 1, 1], [], []>} : vector<8x32xbf16>, vector<32x32xbf16>, vector<8x32xf32> -> vector<8x32xf32>
    %c0_9 = arith.constant 0 : index
    %c0_10 = arith.constant 0 : index
    %11 = vector.load %arg5[%c0_9, %c0_10] : memref<1x32xf32, #tpu.memory_space<vmem>>, vector<1x32xf32>
    %12 = vector.broadcast %11 : vector<1x32xf32> to vector<8x32xf32>
    %13 = arith.addf %10, %12 : vector<8x32xf32>
    %cst_11 = arith.constant 0.000000e+00 : f32
    %14 = vector.broadcast %cst_11 : f32 to vector<8x32xf32>
    %15 = arith.maximumf %13, %14 : vector<8x32xf32>
    %16 = arith.truncf %15 : vector<8x32xf32> to vector<8x32xbf16>
    %c0_12 = arith.constant 0 : index
    %c0_13 = arith.constant 0 : index
    %17 = vector.load %arg6[%c0_12, %c0_13] : memref<32x128xbf16, #tpu.memory_space<vmem>>, vector<32x128xbf16>
    %cst_14 = arith.constant dense<0.000000e+00> : vector<8x128xf32>
    %18 = tpu.matmul %16, %17, %cst_14 {dimension_numbers = #tpu.dot_dimension_numbers<[1], [0], [0], [1], [0, 0, 1, 1], [], []>} : vector<8x32xbf16>, vector<32x128xbf16>, vector<8x128xf32> -> vector<8x128xf32>
    %c0_15 = arith.constant 0 : index
    %c0_16 = arith.constant 0 : index
    %19 = vector.load %arg7[%c0_15, %c0_16] : memref<1x128xf32, #tpu.memory_space<vmem>>, vector<1x128xf32>
    %20 = vector.broadcast %19 : vector<1x128xf32> to vector<8x128xf32>
    %21 = arith.addf %18, %20 : vector<8x128xf32>
    %c0_17 = arith.constant 0 : index
    %c0_18 = arith.constant 0 : index
    %22 = vector.load %arg8[%c0_17, %c0_18] : memref<8x128xf32, #tpu.memory_space<vmem>>, vector<8x128xf32>
    tpu.vector_store %arg8[%c0_17, %c0_18], %21 {strides = array<i32>} : memref<8x128xf32, #tpu.memory_space<vmem>>, vector<8x128xf32>,
    return
  }
  func.func @transform_0(%arg0: i32) -> (i32, i32) {
    %c0_i32 = arith.constant 0 : i32
    %c0_i32_0 = arith.constant 0 : i32
    return %arg0, %c0_i32 : i32, i32
  }
  func.func @transform_1(%arg0: i32) -> (i32, i32) {
    %c0_i32 = arith.constant 0 : i32
    %c0_i32_0 = arith.constant 0 : i32
    %c0_i32_1 = arith.constant 0 : i32
    return %c0_i32, %c0_i32_0 : i32, i32
  }
  func.func @transform_2(%arg0: i32) -> (i32, i32) {
    %c0_i32 = arith.constant 0 : i32
    %c0_i32_0 = arith.constant 0 : i32
    %c0_i32_1 = arith.constant 0 : i32
    return %c0_i32, %c0_i32_0 : i32, i32
  }
  func.func @transform_3(%arg0: i32) -> (i32, i32) {
    %c0_i32 = arith.constant 0 : i32
    %c0_i32_0 = arith.constant 0 : i32
    %c0_i32_1 = arith.constant 0 : i32
    return %c0_i32, %c0_i32_0 : i32, i32
  }
  func.func @transform_4(%arg0: i32) -> (i32, i32) {
    %c0_i32 = arith.constant 0 : i32
    %c0_i32_0 = arith.constant 0 : i32
    %c0_i32_1 = arith.constant 0 : i32
    return %c0_i32, %c0_i32_0 : i32, i32
  }
  func.func @transform_5(%arg0: i32) -> (i32, i32) {
    %c0_i32 = arith.constant 0 : i32
    %c0_i32_0 = arith.constant 0 : i32
    %c0_i32_1 = arith.constant 0 : i32
    return %c0_i32, %c0_i32_0 : i32, i32
  }
  func.func @transform_6(%arg0: i32) -> (i32, i32) {
    %c0_i32 = arith.constant 0 : i32
    %c0_i32_0 = arith.constant 0 : i32
    %c0_i32_1 = arith.constant 0 : i32
    return %c0_i32, %c0_i32_0 : i32, i32
  }
  func.func @transform_7(%arg0: i32) -> (i32, i32) {
    %c0_i32 = arith.constant 0 : i32
    %c0_i32_0 = arith.constant 0 : i32
    return %arg0, %c0_i32 : i32, i32
  }
}

</mosaic_0001>

<llo_original>
// kernel: tpu_custom_call.1
$region0: #{tpu_custom_call.1}
  #allocation0 [shape = 'u32[]', space=smem, size = 0x4, offset = 0x4, fixed_abs, tag = 'smem constant byte address 0x4 - core index']
  #allocation1 [shape = 'u32[144,128]{1,0:T(1,128)}', space=vmem, size = 0x12000, scoped, tag = 'internal scratch']
  %s0 = inlined_call_operand.hbm [shape: bf16[8,32], index: 0, kind: input, shape index: {}]
  %s1 = inlined_call_operand.hbm [shape: bf16[32,32], index: 1, kind: input, shape index: {}]
  %s2 = inlined_call_operand.vmem [shape: f32[1,32], index: 2, kind: input, shape index: {}]
  %s3 = inlined_call_operand.hbm [shape: bf16[32,32], index: 3, kind: input, shape index: {}]
  %s4 = inlined_call_operand.vmem [shape: f32[1,32], index: 4, kind: input, shape index: {}]
  %s5 = inlined_call_operand.vmem [shape: bf16[32,128], index: 5, kind: input, shape index: {}]
  %s6 = inlined_call_operand.vmem [shape: f32[1,128], index: 6, kind: input, shape index: {}]
  %s7 = inlined_call_operand.hbm [shape: f32[8,128], index: 7, kind: output, shape index: {}]
  %s8 = sld [smem:[#allocation0]]
  $region50: #{tpu_custom_call.1} parent=0
    _
  %s10 = ssub.s32 1, %s8
  %s11 = scalar_select 0, %s10, %s8
  $region1: #{tpu_custom_call.1} parent=0
    #allocation2 [shape = 'u8[2048]{0}', space=vmem, size = 0x800, scoped, tag = 'input window, operand 0, single buffered']
    #allocation3 [shape = 's32[1]{0}', space=sflag, size = 0x4, scoped, tag = 'scoped memory for tpu_custom_call.1']
    #allocation4 [shape = 's32[1]{0}', space=sflag, size = 0x4, scoped, tag = 'scoped memory for tpu_custom_call.1']
    #allocation5 [shape = 'u8[8192]{0}', space=vmem, size = 0x2000, scoped, tag = 'input window, operand 1, single buffered']
    #allocation6 [shape = 's32[1]{0}', space=sflag, size = 0x4, scoped, tag = 'scoped memory for tpu_custom_call.1']
    #allocation7 [shape = 'u8[8192]{0}', space=vmem, size = 0x2000, scoped, tag = 'input window, operand 3, single buffered']
    #allocation8 [shape = 'u8[4096]{0}', space=vmem, size = 0x1000, scoped, tag = 'output window, operand 0, single buffered']
    %12 = vsyncpa [#allocation3], 0
    %13 = vsyncpa [#allocation6], 0
    %14 = vsyncpa [#allocation4], 0
    // Predicated region
    $region2: #{tpu_custom_call.1} parent=1 // pred_check
      _
    $region3: #{tpu_custom_call.1} parent=1 // pred_check_branch
      %16 = sbr.rel (0) target = $region5
    $region4: #{tpu_custom_call.1} parent=1 // pred_region
      %s18 = ssub.s32 64, 64
      %19 = vsyncadd [#allocation3], %s18
      %s21 = sshll.u32 [#allocation2], 4
      %s22 = int_to_ptr.vmem [resolvable:$true] %s21
      %24 = dma.hbm_to_vmem [thread:$0]  %s0, 64, %s22, [#allocation3]
    $region5: #{tpu_custom_call.1} parent=1 // pred_fallthru
      _
    // Predicated region
    $region6: #{tpu_custom_call.1} parent=1 // pred_check
      _
    $region7: #{tpu_custom_call.1} parent=1 // pred_check_branch
      %26 = sbr.rel (0) target = $region9
    $region8: #{tpu_custom_call.1} parent=1 // pred_region
      %s28 = ssub.s32 256, 256
      %29 = vsyncadd [#allocation6], %s28
      %s30 = sshll.u32 [#allocation5], 4
      %s31 = int_to_ptr.vmem [resolvable:$true] %s30
      %36 = dma.hbm_to_vmem [thread:$0]  %s1, 256, %s31, [#allocation6], 64, 64, 4
    $region9: #{tpu_custom_call.1} parent=1 // pred_fallthru
      _
    // Predicated region
    $region10: #{tpu_custom_call.1} parent=1 // pred_check
      _
    $region11: #{tpu_custom_call.1} parent=1 // pred_check_branch
      %38 = sbr.rel (0) target = $region13
    $region12: #{tpu_custom_call.1} parent=1 // pred_region
      _
    $region13: #{tpu_custom_call.1} parent=1 // pred_fallthru
      _
    // Predicated region
    $region14: #{tpu_custom_call.1} parent=1 // pred_check
      _
    $region15: #{tpu_custom_call.1} parent=1 // pred_check_branch
      %40 = sbr.rel (0) target = $region17
    $region16: #{tpu_custom_call.1} parent=1 // pred_region
      %s42 = ssub.s32 256, 256
      %43 = vsyncadd [#allocation6], %s42
      %s44 = sshll.u32 [#allocation7], 4
      %s45 = int_to_ptr.vmem [resolvable:$true] %s44
      %50 = dma.hbm_to_vmem [thread:$0]  %s3, 256, %s45, [#allocation6], 64, 64, 4
    $region17: #{tpu_custom_call.1} parent=1 // pred_fallthru
      _
    // Predicated region
    $region18: #{tpu_custom_call.1} parent=1 // pred_check
      _
    $region19: #{tpu_custom_call.1} parent=1 // pred_check_branch
      %52 = sbr.rel (0) target = $region21
    $region20: #{tpu_custom_call.1} parent=1 // pred_region
      _
    $region21: #{tpu_custom_call.1} parent=1 // pred_fallthru
      _
    // Predicated region
    $region22: #{tpu_custom_call.1} parent=1 // pred_check
      _
    $region23: #{tpu_custom_call.1} parent=1 // pred_check_branch
      %54 = sbr.rel (0) target = $region25
    $region24: #{tpu_custom_call.1} parent=1 // pred_region
      _
    $region25: #{tpu_custom_call.1} parent=1 // pred_fallthru
      _
    // Predicated region
    $region26: #{tpu_custom_call.1} parent=1 // pred_check
      _
    $region27: #{tpu_custom_call.1} parent=1 // pred_check_branch
      %56 = sbr.rel (0) target = $region29
    $region28: #{tpu_custom_call.1} parent=1 // pred_region
      _
    $region29: #{tpu_custom_call.1} parent=1 // pred_fallthru
      _
    // Predicated region
    $region30: #{tpu_custom_call.1} parent=1 // pred_check
      _
    $region31: #{tpu_custom_call.1} parent=1 // pred_check_branch
      %58 = sbr.rel (0) target = $region33
    $region32: #{tpu_custom_call.1} parent=1 // pred_region
      %59 = dma.done [#allocation3], 64
    $region33: #{tpu_custom_call.1} parent=1 // pred_fallthru
      _
    // Predicated region
    $region34: #{tpu_custom_call.1} parent=1 // pred_check
      _
    $region35: #{tpu_custom_call.1} parent=1 // pred_check_branch
      %61 = sbr.rel (0) target = $region37
    $region36: #{tpu_custom_call.1} parent=1 // pred_region
      %62 = dma.done [#allocation6], 256
    $region37: #{tpu_custom_call.1} parent=1 // pred_fallthru
      _
    // Predicated region
    $region38: #{tpu_custom_call.1} parent=1 // pred_check
      _
    $region39: #{tpu_custom_call.1} parent=1 // pred_check_branch
      %64 = sbr.rel (0) target = $region41
    $region40: #{tpu_custom_call.1} parent=1 // pred_region
      %65 = dma.done [#allocation6], 256
    $region41: #{tpu_custom_call.1} parent=1 // pred_fallthru
      _
    %v67 = vld [vmem:[#allocation2] sm:$0xf]
    %v68 = vld [vmem:[#allocation5] sm:$0xf]
    %v69 = vld [vmem:[#allocation5 + $0x4] sm:$0xf]
    %v70 = vld [vmem:[#allocation5 + $0x8] sm:$0xf]
    %v71 = vld [vmem:[#allocation5 + $0xc] sm:$0xf]
    %v72 = vld [vmem:[%s2] sm:$0x1]
    %v74 = vlaneseq
    %v75 = vshrl.u32 %v74, 7
    %v76 = vsub.s32 0, %v75
    %v77 = vrot.slane %v72, %v76
    %v83 = vunpack.c.l.b16 %v68
    %v84 = vunpack.c.l.b16 %v69
    %v85 = vunpack.c.l.b16 %v70
    %v86 = vunpack.c.l.b16 %v71
    %v87 = vpack.c.b16 %v84, %v83
    %v88 = vpack.c.b16 %v86, %v85
    %vm91 = vcmask 261120
    %v93 = vsel %vm91, %v67, 0
    %95 = vmatprep.subr.bf16.mxu0 0
    %96 = vmatpush1.bf16.msra.mxu0 %v87
    %97 = vmatprep.subr.bf16.mxu0 0
    %98 = vmatpush1.bf16.msra.mxu0 %v88
    %99 = vmatprep.subr.bf16.mxu0 0
    %100 = vmatpush1.bf16.msra.mxu0 0
    %101 = vmatprep.subr.bf16.mxu0 0
    %102 = vmatpush1.bf16.msra.mxu0 0
    %103 = vmatprep.subr.bf16.mxu0 0
    %104 = vmatpush1.bf16.msra.mxu0 0
    %105 = vmatprep.subr.bf16.mxu0 0
    %106 = vmatpush1.bf16.msra.mxu0 0
    %107 = vmatprep.subr.bf16.mxu0 0
    %108 = vmatpush1.bf16.msra.mxu0 0
    %109 = vmatprep.subr.bf16.mxu0 0
    %110 = vmatpush1.bf16.msra.mxu0 0
    %111 = vmatprep.subr.bf16.mxu0 0
    %112 = vmatpush1.bf16.msra.mxu0 0
    %113 = vmatprep.subr.bf16.mxu0 0
    %114 = vmatpush1.bf16.msra.mxu0 0
    %115 = vmatprep.subr.bf16.mxu0 0
    %116 = vmatpush1.bf16.msra.mxu0 0
    %117 = vmatprep.subr.bf16.mxu0 0
    %118 = vmatpush1.bf16.msra.mxu0 0
    %119 = vmatprep.subr.bf16.mxu0 0
    %120 = vmatpush1.bf16.msra.mxu0 0
    %121 = vmatprep.subr.bf16.mxu0 0
    %122 = vmatpush1.bf16.msra.mxu0 0
    %123 = vmatprep.subr.bf16.mxu0 0
    %124 = vmatpush1.bf16.msra.mxu0 0
    %125 = vmatprep.subr.bf16.mxu0 0
    %126 = vmatpush1.bf16.msra.mxu0 0
    %127 = vmatprep.mubr.bf16.mxu0 0
    %128 = vmatmul.mubr.bf16.gmra.mrb[0].mxu0 %v93
    %v129 = vpop.f32.mrb[0].mxu0
    %v130 = vadd.f32 %v77, %v129
    %v131 = vpop.f32.mrb[0].mxu0
    %v132 = vpop.f32.mrb[0].mxu0
    %v133 = vpop.f32.mrb[0].mxu0
    %134 = vdwg.mxu0
    %v135 = vmax.f32 %v130, 0.0
    %v136 = vpack.c.bf16 %v135, %v135
    %v137 = vld [vmem:[#allocation7] sm:$0xf]
    %v138 = vld [vmem:[#allocation7 + $0x4] sm:$0xf]
    %v139 = vld [vmem:[#allocation7 + $0x8] sm:$0xf]
    %v140 = vld [vmem:[#allocation7 + $0xc] sm:$0xf]
    %v141 = vld [vmem:[%s4] sm:$0x1]
    %v143 = vlaneseq
    %v144 = vshrl.u32 %v143, 7
    %v145 = vsub.s32 0, %v144
    %v146 = vrot.slane %v141, %v145
    %v152 = vunpack.c.l.b16 %v137
    %v153 = vunpack.c.l.b16 %v138
    %v154 = vunpack.c.l.b16 %v139
    %v155 = vunpack.c.l.b16 %v140
    %v156 = vpack.c.b16 %v153, %v152
    %v157 = vpack.c.b16 %v155, %v154
    %v161 = vsel %vm91, %v136, 0
    %163 = vmatprep.subr.bf16.mxu0 0
    %164 = vmatpush1.bf16.msra.mxu0 %v156
    %165 = vmatprep.subr.bf16.mxu0 0
    %166 = vmatpush1.bf16.msra.mxu0 %v157
    %167 = vmatprep.subr.bf16.mxu0 0
    %168 = vmatpush1.bf16.msra.mxu0 0
    %169 = vmatprep.subr.bf16.mxu0 0
    %170 = vmatpush1.bf16.msra.mxu0 0
    %171 = vmatprep.subr.bf16.mxu0 0
    %172 = vmatpush1.bf16.msra.mxu0 0
    %173 = vmatprep.subr.bf16.mxu0 0
    %174 = vmatpush1.bf16.msra.mxu0 0
    %175 = vmatprep.subr.bf16.mxu0 0
    %176 = vmatpush1.bf16.msra.mxu0 0
    %177 = vmatprep.subr.bf16.mxu0 0
    %178 = vmatpush1.bf16.msra.mxu0 0
    %179 = vmatprep.subr.bf16.mxu0 0
    %180 = vmatpush1.bf16.msra.mxu0 0
    %181 = vmatprep.subr.bf16.mxu0 0
    %182 = vmatpush1.bf16.msra.mxu0 0
    %183 = vmatprep.subr.bf16.mxu0 0
    %184 = vmatpush1.bf16.msra.mxu0 0
    %185 = vmatprep.subr.bf16.mxu0 0
    %186 = vmatpush1.bf16.msra.mxu0 0
    %187 = vmatprep.subr.bf16.mxu0 0
    %188 = vmatpush1.bf16.msra.mxu0 0
    %189 = vmatprep.subr.bf16.mxu0 0
    %190 = vmatpush1.bf16.msra.mxu0 0
    %191 = vmatprep.subr.bf16.mxu0 0
    %192 = vmatpush1.bf16.msra.mxu0 0
    %193 = vmatprep.subr.bf16.mxu0 0
    %194 = vmatpush1.bf16.msra.mxu0 0
    %195 = vmatprep.mubr.bf16.mxu0 0
    %196 = vmatmul.mubr.bf16.gmra.mrb[0].mxu0 %v161
    %v197 = vpop.f32.mrb[0].mxu0
    %v198 = vadd.f32 %v146, %v197
    %v199 = vpop.f32.mrb[0].mxu0
    %v200 = vpop.f32.mrb[0].mxu0
    %v201 = vpop.f32.mrb[0].mxu0
    %202 = vdwg.mxu0
    %v203 = vmax.f32 %v198, 0.0
    %v204 = vpack.c.bf16 %v203, %v203
    %v205 = vld [vmem:[%s5] sm:$0xf]
    %v206 = vld [vmem:[%s5 + $0x4] sm:$0xf]
    %v207 = vld [vmem:[%s5 + $0x8] sm:$0xf]
    %v208 = vld [vmem:[%s5 + $0xc] sm:$0xf]
    %v209 = vld [vmem:[%s6] sm:$0x1]
    %v211 = vlaneseq
    %v212 = vshrl.u32 %v211, 7
    %v213 = vsub.s32 0, %v212
    %v214 = vrot.slane %v209, %v213
    %v220 = vunpack.c.l.b16 %v205
    %v221 = vunpack.c.l.b16 %v206
    %v222 = vunpack.c.l.b16 %v207
    %v223 = vunpack.c.l.b16 %v208
    %v224 = vpack.c.b16 %v221, %v220
    %v225 = vpack.c.b16 %v223, %v222
    %v229 = vsel %vm91, %v204, 0
    %231 = vmatprep.subr.bf16.mxu0 0
    %232 = vmatpush1.bf16.msra.mxu0 %v224
    %233 = vmatprep.subr.bf16.mxu0 0
    %234 = vmatpush1.bf16.msra.mxu0 %v225
    %235 = vmatprep.subr.bf16.mxu0 0
    %236 = vmatpush1.bf16.msra.mxu0 0
    %237 = vmatprep.subr.bf16.mxu0 0
    %238 = vmatpush1.bf16.msra.mxu0 0
    %239 = vmatprep.subr.bf16.mxu0 0
    %240 = vmatpush1.bf16.msra.mxu0 0
    %241 = vmatprep.subr.bf16.mxu0 0
    %242 = vmatpush1.bf16.msra.mxu0 0
    %243 = vmatprep.subr.bf16.mxu0 0
    %244 = vmatpush1.bf16.msra.mxu0 0
    %245 = vmatprep.subr.bf16.mxu0 0
    %246 = vmatpush1.bf16.msra.mxu0 0
    %247 = vmatprep.subr.bf16.mxu0 0
    %248 = vmatpush1.bf16.msra.mxu0 0
    %249 = vmatprep.subr.bf16.mxu0 0
    %250 = vmatpush1.bf16.msra.mxu0 0
    %251 = vmatprep.subr.bf16.mxu0 0
    %252 = vmatpush1.bf16.msra.mxu0 0
    %253 = vmatprep.subr.bf16.mxu0 0
    %254 = vmatpush1.bf16.msra.mxu0 0
    %255 = vmatprep.subr.bf16.mxu0 0
    %256 = vmatpush1.bf16.msra.mxu0 0
    %257 = vmatprep.subr.bf16.mxu0 0
    %258 = vmatpush1.bf16.msra.mxu0 0
    %259 = vmatprep.subr.bf16.mxu0 0
    %260 = vmatpush1.bf16.msra.mxu0 0
    %261 = vmatprep.subr.bf16.mxu0 0
    %262 = vmatpush1.bf16.msra.mxu0 0
    %263 = vmatprep.mubr.bf16.mxu0 0
    %264 = vmatmul.mubr.bf16.gmra.mrb[0].mxu0 %v229
    %v265 = vpop.f32.mrb[0].mxu0
    %v266 = vadd.f32 %v214, %v265
    %v267 = vpop.f32.mrb[0].mxu0
    %v268 = vpop.f32.mrb[0].mxu0
    %v269 = vpop.f32.mrb[0].mxu0
    %270 = vdwg.mxu0
    %271 = vst [vmem:[#allocation8] sm:$0xff] %v266
    // Predicated region
    $region42: #{tpu_custom_call.1} parent=1 // pred_check
      _
    $region43: #{tpu_custom_call.1} parent=1 // pred_check_branch
      %273 = sbr.rel (0) target = $region45
    $region44: #{tpu_custom_call.1} parent=1 // pred_region
      %s275 = ssub.s32 128, 128
      %276 = vsyncadd [#allocation4], %s275
      %s278 = sshll.u32 [#allocation8], 4
      %s279 = int_to_ptr.vmem [resolvable:$true] %s278
      %281 = dma.vmem_to_hbm [thread:$0]  %s279, 128, %s7, [#allocation4]
    $region45: #{tpu_custom_call.1} parent=1 // pred_fallthru
      _
    // Predicated region
    $region46: #{tpu_custom_call.1} parent=1 // pred_check
      _
    $region47: #{tpu_custom_call.1} parent=1 // pred_check_branch
      %283 = sbr.rel (0) target = $region49
    $region48: #{tpu_custom_call.1} parent=1 // pred_region
      %284 = dma.done [#allocation4], 128
    $region49: #{tpu_custom_call.1} parent=1 // pred_fallthru
      _
    %285 = vsyncpa [#allocation3], 1
    %286 = vsyncpa [#allocation6], 1
    %287 = vsyncpa [#allocation4], 1

</llo_original>
